<compile_context>
chip_gen: v7x
topology: tpu7x:2x2x1
jax: 0.10.0
libtpu: 0.0.40
codegen_flags: <defaults>
</compile_context>

<pallas_src>
import jax
import jax.numpy as jnp
from jax.experimental import pallas as pl
from jax.experimental.pallas import tpu as pltpu

THRESH = 0.3
DECAY = 0.2
KSIZE = 3
PAD = 1


def _make_snn_kernel(block_n, H, W, Cin, Cout, has_mem):
    HW = H * W

    def kernel(x_ref, w_ref, b_ref, *rest):
        # x_ref:   (block_n, Cin, H*W)
        # w_ref:   (Cout, 9*Cin)      rows ordered (ky, kx, ci)
        # b_ref:   (Cout, 1)
        # mem_ref: (block_n, Cout, H*W)   [only if has_mem]
        # outputs: spike_ref, memout_ref  (block_n, Cout, H*W)
        if has_mem:
            mem_ref, spike_ref, memout_ref = rest
        else:
            spike_ref, memout_ref = rest

        # Column index of every flattened spatial position (lane axis).
        col = jax.lax.broadcasted_iota(jnp.int32, (1, HW), 1) % W
        ok_left = col >= 1           # valid lanes for a dx = -1 tap
        ok_right = col <= (W - 2)    # valid lanes for a dx = +1 tap

        w_mat = w_ref[...]           # (Cout, 9*Cin)
        b_col = b_ref[...]           # (Cout, 1)

        for i in range(block_n):
            x_img = x_ref[i]         # (Cin, H*W)

            # im2col slab: row (ky*3+kx)*Cin + ci holds x shifted by
            # (dy, dx) = (ky-1, kx-1) with zeros outside the image.
            taps = []
            for ky in range(KSIZE):
                dy = ky - 1
                for kx in range(KSIZE):
                    dx = kx - 1
                    s = dy * W + dx
                    if s > 0:
                        sh = jnp.concatenate(
                            [x_img[:, s:],
                             jnp.zeros((Cin, s), jnp.float32)], axis=1)
                    elif s < 0:
                        sh = jnp.concatenate(
                            [jnp.zeros((Cin, -s), jnp.float32),
                             x_img[:, :HW + s]], axis=1)
                    else:
                        sh = x_img
                    # Horizontal taps must not read across row boundaries.
                    if dx == -1:
                        sh = jnp.where(ok_left, sh, 0.0)
                    elif dx == 1:
                        sh = jnp.where(ok_right, sh, 0.0)
                    taps.append(sh)
            slab = jnp.concatenate(taps, axis=0)          # (9*Cin, H*W)

            # Single fused matmul: (Cout, 9*Cin) x (9*Cin, H*W).
            conv = jnp.dot(w_mat, slab,
                           preferred_element_type=jnp.float32)  # (Cout, H*W)
            m = conv + b_col
            if has_mem:
                m = m + mem_ref[i]
            spike = (m > THRESH).astype(jnp.float32)   # ActFun_b5: input.gt(thresh)
            spike_ref[i] = spike
            memout_ref[i] = m * DECAY * (1.0 - spike)

    return kernel


@jax.jit
def scnn_single_conv_b5_forward(x_nchw, weight_oihw, bias, mem_nchw=None):
    """x: (N, Cin, H, W); weight: (Cout, Cin, 3, 3); bias: (Cout,).

    Returns (spike, mem), both (N, Cout, H, W), matching the PyTorch module.
    """
    N, Cin, H, W = x_nchw.shape
    Cout = weight_oihw.shape[0]
    HW = H * W
    has_mem = mem_nchw is not None

    # Flatten spatial dims onto the lane axis; stay channel-major (NCHW).
    x_flat = x_nchw.reshape(N, Cin, HW).astype(jnp.float32)
    # (Cout, Cin, 3, 3) -> (Cout, ky, kx, Cin) -> (Cout, 9*Cin): matches the
    # slab row ordering (ky*3 + kx)*Cin + ci used in the kernel.
    w_mat = jnp.transpose(weight_oihw, (0, 2, 3, 1)).reshape(
        Cout, KSIZE * KSIZE * Cin).astype(jnp.float32)
    b_col = bias.reshape(Cout, 1).astype(jnp.float32)

    # Process as many images per grid step as cleanly divides N.
    block_n = 1
    for cand in (8, 4, 2, 1):
        if cand <= N and N % cand == 0:
            block_n = cand
            break
    grid = (N // block_n,)

    kernel = _make_snn_kernel(block_n, H, W, Cin, Cout, has_mem)

    in_specs = [
        pl.BlockSpec((block_n, Cin, HW), lambda n: (n, 0, 0)),
        pl.BlockSpec((Cout, KSIZE * KSIZE * Cin), lambda n: (0, 0)),
        pl.BlockSpec((Cout, 1), lambda n: (0, 0)),
    ]
    inputs = [x_flat, w_mat, b_col]
    io_aliases = {}
    if has_mem:
        mem_flat = mem_nchw.reshape(N, Cout, HW).astype(jnp.float32)
        in_specs.append(pl.BlockSpec((block_n, Cout, HW), lambda n: (n, 0, 0)))
        inputs.append(mem_flat)
        io_aliases = {3: 1}  # reuse the incoming-mem buffer for the mem output

    out_specs = [
        pl.BlockSpec((block_n, Cout, HW), lambda n: (n, 0, 0)),
        pl.BlockSpec((block_n, Cout, HW), lambda n: (n, 0, 0)),
    ]
    out_shape = (
        jax.ShapeDtypeStruct((N, Cout, HW), jnp.float32),
        jax.ShapeDtypeStruct((N, Cout, HW), jnp.float32),
    )

    spike_flat, memout_flat = pl.pallas_call(
        kernel,
        out_shape=out_shape,
        grid_spec=pltpu.PrefetchScalarGridSpec(
            num_scalar_prefetch=0,
            grid=grid,
            in_specs=in_specs,
            out_specs=out_specs,
        ),
        input_output_aliases=io_aliases,
        compiler_params=pltpu.CompilerParams(
            dimension_semantics=("parallel",)),
    )(*inputs)

    return (spike_flat.reshape(N, Cout, H, W),
            memout_flat.reshape(N, Cout, H, W))


def _reference(x_nchw, weight_oihw, bias, mem_nchw=None):
    conv = jax.lax.conv_general_dilated(
        x_nchw.astype(jnp.float32), weight_oihw.astype(jnp.float32),
        window_strides=(1, 1), padding=((PAD, PAD), (PAD, PAD)),
        dimension_numbers=("NCHW", "OIHW", "NCHW"))
    conv = conv + bias.reshape(1, -1, 1, 1)
    mem = conv if mem_nchw is None else mem_nchw + conv
    spike = (mem > THRESH).astype(jnp.float32)
    mem = mem * DECAY * (1.0 - spike)
    return spike, mem


if __name__ == "__main__":
    key = jax.random.PRNGKey(0)
    k_x, k_w, k_b, k_m = jax.random.split(key, 4)

    N, Cin, H, W = 2, 4, 16, 16
    Cout = 8

    x = jax.random.normal(k_x, (N, Cin, H, W), dtype=jnp.float32)
    # Deterministic synthetic parameters (Conv2d(Cin, Cout, 3) shapes).
    fan_in = Cin * KSIZE * KSIZE
    bound = 1.0 / (fan_in ** 0.5)
    weight = jax.random.uniform(k_w, (Cout, Cin, KSIZE, KSIZE),
                                minval=-bound, maxval=bound, dtype=jnp.float32)
    bias = jax.random.uniform(k_b, (Cout,), minval=-bound, maxval=bound,
                              dtype=jnp.float32)
    mem_in = jax.random.normal(k_m, (N, Cout, H, W), dtype=jnp.float32)

    # mem=None path (first timestep) and explicit-mem path.
    spike0, mem0 = scnn_single_conv_b5_forward(x, weight, bias, None)
    spike1, mem1 = scnn_single_conv_b5_forward(x, weight, bias, mem_in)
    jax.block_until_ready((spike0, mem0, spike1, mem1))

    rs0, rm0 = _reference(x, weight, bias, None)
    rs1, rm1 = _reference(x, weight, bias, mem_in)
    assert jnp.allclose(spike0, rs0)
    assert jnp.allclose(mem0, rm0, atol=1e-5)
    assert jnp.allclose(spike1, rs1)
    assert jnp.allclose(mem1, rm1, atol=1e-5)

    print("KERNEL_OK")
</pallas_src>

<mosaic_0001>
module attributes {stable_mosaic.version = 11 : i64} {
  func.func @kernel(%arg0: i32, %arg1: memref<2x4x256xf32, #tpu.memory_space<vmem>>, %arg2: memref<8x36xf32, #tpu.memory_space<vmem>>, %arg3: memref<8x1xf32, #tpu.memory_space<vmem>>, %arg4: memref<2x8x256xf32, #tpu.memory_space<vmem>>, %arg5: memref<2x8x256xf32, #tpu.memory_space<vmem>>) attributes {dimension_semantics = [#tpu.dimension_semantics<parallel>], iteration_bounds = array<i64: 1>, scalar_prefetch = 0 : i64, scratch_operands = 0 : i64, tpu.core_type = #tpu.core_type<tc>, window_params = [{transform_indices = @transform_0, window_bounds = array<i64: 2, 4, 256>}, {pipeline_mode = #tpu.pipeline_mode<synchronous>, transform_indices = @transform_1, window_bounds = array<i64: 8, 36>}, {pipeline_mode = #tpu.pipeline_mode<synchronous>, transform_indices = @transform_2, window_bounds = array<i64: 8, 1>}, {transform_indices = @transform_3, window_bounds = array<i64: 2, 8, 256>}, {transform_indices = @transform_4, window_bounds = array<i64: 2, 8, 256>}]} {
    %0 = tpu.iota {dimensions = array<i32: 1>} : vector<1x256xi32>
    %c16_i32 = arith.constant 16 : i32
    %c0_i32 = arith.constant 0 : i32
    %1 = arith.cmpi eq, %c16_i32, %c0_i32 : i32
    %c1_i32 = arith.constant 1 : i32
    %2 = arith.select %1, %c1_i32, %c16_i32 : i32
    %3 = vector.broadcast %2 : i32 to vector<1x256xi32>
    %4 = arith.remsi %0, %3 : vector<1x256xi32>
    %c0_i32_0 = arith.constant 0 : i32
    %5 = vector.broadcast %c0_i32_0 : i32 to vector<1x256xi32>
    %6 = arith.cmpi ne, %4, %5 : vector<1x256xi32>
    %c0_i32_1 = arith.constant 0 : i32
    %7 = vector.broadcast %c0_i32_1 : i32 to vector<1x256xi32>
    %8 = arith.cmpi slt, %4, %7 : vector<1x256xi32>
    %c0_i32_2 = arith.constant 0 : i32
    %9 = arith.cmpi slt, %2, %c0_i32_2 : i32
    %10 = vector.broadcast %9 : i1 to vector<1x256xi1>
    %11 = vector.broadcast %10 : vector<1x256xi1> to vector<1x256xi1>
    %12 = arith.xori %8, %11 : vector<1x256xi1>
    %13 = arith.andi %12, %6 : vector<1x256xi1>
    %14 = vector.broadcast %2 : i32 to vector<1x256xi32>
    %15 = arith.addi %4, %14 : vector<1x256xi32>
    %16 = arith.select %13, %15, %4 : vector<1x256xi1>, vector<1x256xi32>
    %c1_i32_3 = arith.constant 1 : i32
    %17 = vector.broadcast %c1_i32_3 : i32 to vector<1x256xi32>
    %18 = arith.cmpi sge, %16, %17 : vector<1x256xi32>
    %c14_i32 = arith.constant 14 : i32
    %19 = vector.broadcast %c14_i32 : i32 to vector<1x256xi32>
    %20 = arith.cmpi sle, %16, %19 : vector<1x256xi32>
    %c0 = arith.constant 0 : index
    %c0_4 = arith.constant 0 : index
    %21 = vector.load %arg2[%c0, %c0_4] : memref<8x36xf32, #tpu.memory_space<vmem>>, vector<8x36xf32>
    %c0_5 = arith.constant 0 : index
    %c0_6 = arith.constant 0 : index
    %22 = vector.load %arg3[%c0_5, %c0_6] : memref<8x1xf32, #tpu.memory_space<vmem>>, vector<8x1xf32>
    %c0_7 = arith.constant 0 : index
    %c0_8 = arith.constant 0 : index
    %c0_9 = arith.constant 0 : index
    %23 = vector.load %arg1[%c0_7, %c0_8, %c0_9] : memref<2x4x256xf32, #tpu.memory_space<vmem>>, vector<1x4x256xf32>
    %24 = vector.shape_cast %23 : vector<1x4x256xf32> to vector<4x256xf32>
    %cst = arith.constant 0.000000e+00 : f32
    %25 = vector.broadcast %cst : f32 to vector<4x17xf32>
    %26 = vector.extract_strided_slice %24 {offsets = [0, 0], sizes = [4, 239], strides = [1, 1]} : vector<4x256xf32> to vector<4x239xf32>
    %27 = tpu.concatenate %25, %26 in 1 : vector<4x17xf32>, vector<4x239xf32> -> vector<4x256xf32>
    %cst_10 = arith.constant 0.000000e+00 : f32
    %28 = vector.shape_cast %18 : vector<1x256xi1> to vector<1x256xi1>
    %29 = vector.broadcast %28 : vector<1x256xi1> to vector<4x256xi1>
    %30 = vector.broadcast %cst_10 : f32 to vector<4x256xf32>
    %31 = arith.select %29, %27, %30 : vector<4x256xi1>, vector<4x256xf32>
    %cst_11 = arith.constant 0.000000e+00 : f32
    %32 = vector.broadcast %cst_11 : f32 to vector<4x16xf32>
    %33 = vector.extract_strided_slice %24 {offsets = [0, 0], sizes = [4, 240], strides = [1, 1]} : vector<4x256xf32> to vector<4x240xf32>
    %34 = tpu.concatenate %32, %33 in 1 : vector<4x16xf32>, vector<4x240xf32> -> vector<4x256xf32>
    %cst_12 = arith.constant 0.000000e+00 : f32
    %35 = vector.broadcast %cst_12 : f32 to vector<4x15xf32>
    %36 = vector.extract_strided_slice %24 {offsets = [0, 0], sizes = [4, 241], strides = [1, 1]} : vector<4x256xf32> to vector<4x241xf32>
    %37 = tpu.concatenate %35, %36 in 1 : vector<4x15xf32>, vector<4x241xf32> -> vector<4x256xf32>
    %cst_13 = arith.constant 0.000000e+00 : f32
    %38 = vector.shape_cast %20 : vector<1x256xi1> to vector<1x256xi1>
    %39 = vector.broadcast %38 : vector<1x256xi1> to vector<4x256xi1>
    %40 = vector.broadcast %cst_13 : f32 to vector<4x256xf32>
    %41 = arith.select %39, %37, %40 : vector<4x256xi1>, vector<4x256xf32>
    %cst_14 = arith.constant 0.000000e+00 : f32
    %42 = vector.broadcast %cst_14 : f32 to vector<4x1xf32>
    %43 = vector.extract_strided_slice %24 {offsets = [0, 0], sizes = [4, 255], strides = [1, 1]} : vector<4x256xf32> to vector<4x255xf32>
    %44 = tpu.concatenate %42, %43 in 1 : vector<4x1xf32>, vector<4x255xf32> -> vector<4x256xf32>
    %cst_15 = arith.constant 0.000000e+00 : f32
    %45 = vector.shape_cast %18 : vector<1x256xi1> to vector<1x256xi1>
    %46 = vector.broadcast %45 : vector<1x256xi1> to vector<4x256xi1>
    %47 = vector.broadcast %cst_15 : f32 to vector<4x256xf32>
    %48 = arith.select %46, %44, %47 : vector<4x256xi1>, vector<4x256xf32>
    %49 = vector.extract_strided_slice %24 {offsets = [0, 1], sizes = [4, 255], strides = [1, 1]} : vector<4x256xf32> to vector<4x255xf32>
    %cst_16 = arith.constant 0.000000e+00 : f32
    %50 = vector.broadcast %cst_16 : f32 to vector<4x1xf32>
    %51 = tpu.concatenate %49, %50 in 1 : vector<4x255xf32>, vector<4x1xf32> -> vector<4x256xf32>
    %cst_17 = arith.constant 0.000000e+00 : f32
    %52 = vector.shape_cast %20 : vector<1x256xi1> to vector<1x256xi1>
    %53 = vector.broadcast %52 : vector<1x256xi1> to vector<4x256xi1>
    %54 = vector.broadcast %cst_17 : f32 to vector<4x256xf32>
    %55 = arith.select %53, %51, %54 : vector<4x256xi1>, vector<4x256xf32>
    %56 = vector.extract_strided_slice %24 {offsets = [0, 15], sizes = [4, 241], strides = [1, 1]} : vector<4x256xf32> to vector<4x241xf32>
    %cst_18 = arith.constant 0.000000e+00 : f32
    %57 = vector.broadcast %cst_18 : f32 to vector<4x15xf32>
    %58 = tpu.concatenate %56, %57 in 1 : vector<4x241xf32>, vector<4x15xf32> -> vector<4x256xf32>
    %cst_19 = arith.constant 0.000000e+00 : f32
    %59 = vector.shape_cast %18 : vector<1x256xi1> to vector<1x256xi1>
    %60 = vector.broadcast %59 : vector<1x256xi1> to vector<4x256xi1>
    %61 = vector.broadcast %cst_19 : f32 to vector<4x256xf32>
    %62 = arith.select %60, %58, %61 : vector<4x256xi1>, vector<4x256xf32>
    %63 = vector.extract_strided_slice %24 {offsets = [0, 16], sizes = [4, 240], strides = [1, 1]} : vector<4x256xf32> to vector<4x240xf32>
    %cst_20 = arith.constant 0.000000e+00 : f32
    %64 = vector.broadcast %cst_20 : f32 to vector<4x16xf32>
    %65 = tpu.concatenate %63, %64 in 1 : vector<4x240xf32>, vector<4x16xf32> -> vector<4x256xf32>
    %66 = vector.extract_strided_slice %24 {offsets = [0, 17], sizes = [4, 239], strides = [1, 1]} : vector<4x256xf32> to vector<4x239xf32>
    %cst_21 = arith.constant 0.000000e+00 : f32
    %67 = vector.broadcast %cst_21 : f32 to vector<4x17xf32>
    %68 = tpu.concatenate %66, %67 in 1 : vector<4x239xf32>, vector<4x17xf32> -> vector<4x256xf32>
    %cst_22 = arith.constant 0.000000e+00 : f32
    %69 = vector.shape_cast %20 : vector<1x256xi1> to vector<1x256xi1>
    %70 = vector.broadcast %69 : vector<1x256xi1> to vector<4x256xi1>
    %71 = vector.broadcast %cst_22 : f32 to vector<4x256xf32>
    %72 = arith.select %70, %68, %71 : vector<4x256xi1>, vector<4x256xf32>
    %73 = tpu.concatenate %31, %34, %41, %48, %24, %55, %62, %65, %72 in 0 : vector<4x256xf32>, vector<4x256xf32>, vector<4x256xf32>, vector<4x256xf32>, vector<4x256xf32>, vector<4x256xf32>, vector<4x256xf32>, vector<4x256xf32>, vector<4x256xf32> -> vector<36x256xf32>
    %cst_23 = arith.constant dense<0.000000e+00> : vector<8x256xf32>
    %74 = tpu.matmul %21, %73, %cst_23 {dimension_numbers = #tpu.dot_dimension_numbers<[1], [0], [0], [1], [0, 0, 1, 1], [], []>} : vector<8x36xf32>, vector<36x256xf32>, vector<8x256xf32> -> vector<8x256xf32>
    %75 = vector.broadcast %22 : vector<8x1xf32> to vector<8x256xf32>
    %76 = arith.addf %74, %75 : vector<8x256xf32>
    %cst_24 = arith.constant 3.000000e-01 : f32
    %77 = vector.broadcast %cst_24 : f32 to vector<8x256xf32>
    %78 = arith.cmpf ogt, %76, %77 : vector<8x256xf32>
    %79 = arith.extui %78 : vector<8x256xi1> to vector<8x256xi32>
    %80 = arith.sitofp %79 : vector<8x256xi32> to vector<8x256xf32>
    %c0_25 = arith.constant 0 : index
    %c0_26 = arith.constant 0 : index
    %c0_27 = arith.constant 0 : index
    %81 = vector.load %arg4[%c0_25, %c0_26, %c0_27] : memref<2x8x256xf32, #tpu.memory_space<vmem>>, vector<1x8x256xf32>
    %82 = vector.shape_cast %81 : vector<1x8x256xf32> to vector<8x256xf32>
    %83 = vector.shape_cast %80 : vector<8x256xf32> to vector<1x8x256xf32>
    tpu.vector_store %arg4[%c0_25, %c0_26, %c0_27], %83 {strides = array<i32>} : memref<2x8x256xf32, #tpu.memory_space<vmem>>, vector<1x8x256xf32>,
    %cst_28 = arith.constant 2.000000e-01 : f32
    %84 = vector.broadcast %cst_28 : f32 to vector<8x256xf32>
    %85 = arith.mulf %76, %84 : vector<8x256xf32>
    %cst_29 = arith.constant 1.000000e+00 : f32
    %86 = vector.broadcast %cst_29 : f32 to vector<8x256xf32>
    %87 = arith.subf %86, %80 : vector<8x256xf32>
    %88 = arith.mulf %85, %87 : vector<8x256xf32>
    %c0_30 = arith.constant 0 : index
    %c0_31 = arith.constant 0 : index
    %c0_32 = arith.constant 0 : index
    %89 = vector.load %arg5[%c0_30, %c0_31, %c0_32] : memref<2x8x256xf32, #tpu.memory_space<vmem>>, vector<1x8x256xf32>
    %90 = vector.shape_cast %89 : vector<1x8x256xf32> to vector<8x256xf32>
    %91 = vector.shape_cast %88 : vector<8x256xf32> to vector<1x8x256xf32>
    tpu.vector_store %arg5[%c0_30, %c0_31, %c0_32], %91 {strides = array<i32>} : memref<2x8x256xf32, #tpu.memory_space<vmem>>, vector<1x8x256xf32>,
    %c1 = arith.constant 1 : index
    %c0_33 = arith.constant 0 : index
    %c0_34 = arith.constant 0 : index
    %92 = vector.load %arg1[%c1, %c0_33, %c0_34] : memref<2x4x256xf32, #tpu.memory_space<vmem>>, vector<1x4x256xf32>
    %93 = vector.shape_cast %92 : vector<1x4x256xf32> to vector<4x256xf32>
    %cst_35 = arith.constant 0.000000e+00 : f32
    %94 = vector.broadcast %cst_35 : f32 to vector<4x17xf32>
    %95 = vector.extract_strided_slice %93 {offsets = [0, 0], sizes = [4, 239], strides = [1, 1]} : vector<4x256xf32> to vector<4x239xf32>
    %96 = tpu.concatenate %94, %95 in 1 : vector<4x17xf32>, vector<4x239xf32> -> vector<4x256xf32>
    %cst_36 = arith.constant 0.000000e+00 : f32
    %97 = vector.shape_cast %18 : vector<1x256xi1> to vector<1x256xi1>
    %98 = vector.broadcast %97 : vector<1x256xi1> to vector<4x256xi1>
    %99 = vector.broadcast %cst_36 : f32 to vector<4x256xf32>
    %100 = arith.select %98, %96, %99 : vector<4x256xi1>, vector<4x256xf32>
    %cst_37 = arith.constant 0.000000e+00 : f32
    %101 = vector.broadcast %cst_37 : f32 to vector<4x16xf32>
    %102 = vector.extract_strided_slice %93 {offsets = [0, 0], sizes = [4, 240], strides = [1, 1]} : vector<4x256xf32> to vector<4x240xf32>
    %103 = tpu.concatenate %101, %102 in 1 : vector<4x16xf32>, vector<4x240xf32> -> vector<4x256xf32>
    %cst_38 = arith.constant 0.000000e+00 : f32
    %104 = vector.broadcast %cst_38 : f32 to vector<4x15xf32>
    %105 = vector.extract_strided_slice %93 {offsets = [0, 0], sizes = [4, 241], strides = [1, 1]} : vector<4x256xf32> to vector<4x241xf32>
    %106 = tpu.concatenate %104, %105 in 1 : vector<4x15xf32>, vector<4x241xf32> -> vector<4x256xf32>
    %cst_39 = arith.constant 0.000000e+00 : f32
    %107 = vector.shape_cast %20 : vector<1x256xi1> to vector<1x256xi1>
    %108 = vector.broadcast %107 : vector<1x256xi1> to vector<4x256xi1>
    %109 = vector.broadcast %cst_39 : f32 to vector<4x256xf32>
    %110 = arith.select %108, %106, %109 : vector<4x256xi1>, vector<4x256xf32>
    %cst_40 = arith.constant 0.000000e+00 : f32
    %111 = vector.broadcast %cst_40 : f32 to vector<4x1xf32>
    %112 = vector.extract_strided_slice %93 {offsets = [0, 0], sizes = [4, 255], strides = [1, 1]} : vector<4x256xf32> to vector<4x255xf32>
    %113 = tpu.concatenate %111, %112 in 1 : vector<4x1xf32>, vector<4x255xf32> -> vector<4x256xf32>
    %cst_41 = arith.constant 0.000000e+00 : f32
    %114 = vector.shape_cast %18 : vector<1x256xi1> to vector<1x256xi1>
    %115 = vector.broadcast %114 : vector<1x256xi1> to vector<4x256xi1>
    %116 = vector.broadcast %cst_41 : f32 to vector<4x256xf32>
    %117 = arith.select %115, %113, %116 : vector<4x256xi1>, vector<4x256xf32>
    %118 = vector.extract_strided_slice %93 {offsets = [0, 1], sizes = [4, 255], strides = [1, 1]} : vector<4x256xf32> to vector<4x255xf32>
    %cst_42 = arith.constant 0.000000e+00 : f32
    %119 = vector.broadcast %cst_42 : f32 to vector<4x1xf32>
    %120 = tpu.concatenate %118, %119 in 1 : vector<4x255xf32>, vector<4x1xf32> -> vector<4x256xf32>
    %cst_43 = arith.constant 0.000000e+00 : f32
    %121 = vector.shape_cast %20 : vector<1x256xi1> to vector<1x256xi1>
    %122 = vector.broadcast %121 : vector<1x256xi1> to vector<4x256xi1>
    %123 = vector.broadcast %cst_43 : f32 to vector<4x256xf32>
    %124 = arith.select %122, %120, %123 : vector<4x256xi1>, vector<4x256xf32>
    %125 = vector.extract_strided_slice %93 {offsets = [0, 15], sizes = [4, 241], strides = [1, 1]} : vector<4x256xf32> to vector<4x241xf32>
    %cst_44 = arith.constant 0.000000e+00 : f32
    %126 = vector.broadcast %cst_44 : f32 to vector<4x15xf32>
    %127 = tpu.concatenate %125, %126 in 1 : vector<4x241xf32>, vector<4x15xf32> -> vector<4x256xf32>
    %cst_45 = arith.constant 0.000000e+00 : f32
    %128 = vector.shape_cast %18 : vector<1x256xi1> to vector<1x256xi1>
    %129 = vector.broadcast %128 : vector<1x256xi1> to vector<4x256xi1>
    %130 = vector.broadcast %cst_45 : f32 to vector<4x256xf32>
    %131 = arith.select %129, %127, %130 : vector<4x256xi1>, vector<4x256xf32>
    %132 = vector.extract_strided_slice %93 {offsets = [0, 16], sizes = [4, 240], strides = [1, 1]} : vector<4x256xf32> to vector<4x240xf32>
    %cst_46 = arith.constant 0.000000e+00 : f32
    %133 = vector.broadcast %cst_46 : f32 to vector<4x16xf32>
    %134 = tpu.concatenate %132, %133 in 1 : vector<4x240xf32>, vector<4x16xf32> -> vector<4x256xf32>
    %135 = vector.extract_strided_slice %93 {offsets = [0, 17], sizes = [4, 239], strides = [1, 1]} : vector<4x256xf32> to vector<4x239xf32>
    %cst_47 = arith.constant 0.000000e+00 : f32
    %136 = vector.broadcast %cst_47 : f32 to vector<4x17xf32>
    %137 = tpu.concatenate %135, %136 in 1 : vector<4x239xf32>, vector<4x17xf32> -> vector<4x256xf32>
    %cst_48 = arith.constant 0.000000e+00 : f32
    %138 = vector.shape_cast %20 : vector<1x256xi1> to vector<1x256xi1>
    %139 = vector.broadcast %138 : vector<1x256xi1> to vector<4x256xi1>
    %140 = vector.broadcast %cst_48 : f32 to vector<4x256xf32>
    %141 = arith.select %139, %137, %140 : vector<4x256xi1>, vector<4x256xf32>
    %142 = tpu.concatenate %100, %103, %110, %117, %93, %124, %131, %134, %141 in 0 : vector<4x256xf32>, vector<4x256xf32>, vector<4x256xf32>, vector<4x256xf32>, vector<4x256xf32>, vector<4x256xf32>, vector<4x256xf32>, vector<4x256xf32>, vector<4x256xf32> -> vector<36x256xf32>
    %cst_49 = arith.constant dense<0.000000e+00> : vector<8x256xf32>
    %143 = tpu.matmul %21, %142, %cst_49 {dimension_numbers = #tpu.dot_dimension_numbers<[1], [0], [0], [1], [0, 0, 1, 1], [], []>} : vector<8x36xf32>, vector<36x256xf32>, vector<8x256xf32> -> vector<8x256xf32>
    %144 = vector.broadcast %22 : vector<8x1xf32> to vector<8x256xf32>
    %145 = arith.addf %143, %144 : vector<8x256xf32>
    %cst_50 = arith.constant 3.000000e-01 : f32
    %146 = vector.broadcast %cst_50 : f32 to vector<8x256xf32>
    %147 = arith.cmpf ogt, %145, %146 : vector<8x256xf32>
    %148 = arith.extui %147 : vector<8x256xi1> to vector<8x256xi32>
    %149 = arith.sitofp %148 : vector<8x256xi32> to vector<8x256xf32>
    %c1_51 = arith.constant 1 : index
    %c0_52 = arith.constant 0 : index
    %c0_53 = arith.constant 0 : index
    %150 = vector.load %arg4[%c1_51, %c0_52, %c0_53] : memref<2x8x256xf32, #tpu.memory_space<vmem>>, vector<1x8x256xf32>
    %151 = vector.shape_cast %150 : vector<1x8x256xf32> to vector<8x256xf32>
    %152 = vector.shape_cast %149 : vector<8x256xf32> to vector<1x8x256xf32>
    tpu.vector_store %arg4[%c1_51, %c0_52, %c0_53], %152 {strides = array<i32>} : memref<2x8x256xf32, #tpu.memory_space<vmem>>, vector<1x8x256xf32>,
    %cst_54 = arith.constant 2.000000e-01 : f32
    %153 = vector.broadcast %cst_54 : f32 to vector<8x256xf32>
    %154 = arith.mulf %145, %153 : vector<8x256xf32>
    %cst_55 = arith.constant 1.000000e+00 : f32
    %155 = vector.broadcast %cst_55 : f32 to vector<8x256xf32>
    %156 = arith.subf %155, %149 : vector<8x256xf32>
    %157 = arith.mulf %154, %156 : vector<8x256xf32>
    %c1_56 = arith.constant 1 : index
    %c0_57 = arith.constant 0 : index
    %c0_58 = arith.constant 0 : index
    %158 = vector.load %arg5[%c1_56, %c0_57, %c0_58] : memref<2x8x256xf32, #tpu.memory_space<vmem>>, vector<1x8x256xf32>
    %159 = vector.shape_cast %158 : vector<1x8x256xf32> to vector<8x256xf32>
    %160 = vector.shape_cast %157 : vector<8x256xf32> to vector<1x8x256xf32>
    tpu.vector_store %arg5[%c1_56, %c0_57, %c0_58], %160 {strides = array<i32>} : memref<2x8x256xf32, #tpu.memory_space<vmem>>, vector<1x8x256xf32>,
    return
  }
  func.func @transform_0(%arg0: i32) -> (i32, i32, i32) {
    %c0_i32 = arith.constant 0 : i32
    %c0_i32_0 = arith.constant 0 : i32
    %c0_i32_1 = arith.constant 0 : i32
    return %arg0, %c0_i32, %c0_i32_0 : i32, i32, i32
  }
  func.func @transform_1(%arg0: i32) -> (i32, i32) {
    %c0_i32 = arith.constant 0 : i32
    %c0_i32_0 = arith.constant 0 : i32
    %c0_i32_1 = arith.constant 0 : i32
    return %c0_i32, %c0_i32_0 : i32, i32
  }
  func.func @transform_2(%arg0: i32) -> (i32, i32) {
    %c0_i32 = arith.constant 0 : i32
    %c0_i32_0 = arith.constant 0 : i32
    %c0_i32_1 = arith.constant 0 : i32
    return %c0_i32, %c0_i32_0 : i32, i32
  }
  func.func @transform_3(%arg0: i32) -> (i32, i32, i32) {
    %c0_i32 = arith.constant 0 : i32
    %c0_i32_0 = arith.constant 0 : i32
    %c0_i32_1 = arith.constant 0 : i32
    return %arg0, %c0_i32, %c0_i32_0 : i32, i32, i32
  }
  func.func @transform_4(%arg0: i32) -> (i32, i32, i32) {
    %c0_i32 = arith.constant 0 : i32
    %c0_i32_0 = arith.constant 0 : i32
    %c0_i32_1 = arith.constant 0 : i32
    return %arg0, %c0_i32, %c0_i32_0 : i32, i32, i32
  }
}

</mosaic_0001>

<llo_original>
// kernel: scnn_single_conv_b5_forward.1
$region0: #{scnn_single_conv_b5_forward.1}
  #allocation0 [shape = 'u32[]', space=smem, size = 0x4, offset = 0x4, fixed_abs, tag = 'smem constant byte address 0x4 - core index']
  #allocation1 [shape = 'u32[144,128]{1,0:T(1,128)}', space=vmem, size = 0x12000, scoped, tag = 'internal scratch']
  %s0 = inlined_call_operand.vmem [shape: f32[2,4,256], index: 0, kind: input, shape index: {}]
  %s1 = inlined_call_operand.vmem [shape: f32[8,36], index: 1, kind: input, shape index: {}]
  %s2 = inlined_call_operand.vmem [shape: f32[8,1], index: 2, kind: input, shape index: {}]
  %s3 = inlined_call_operand.vmem [shape: f32[2,8,256], index: 3, kind: output, shape index: {0}]
  %s4 = inlined_call_operand.vmem [shape: f32[2,8,256], index: 4, kind: output, shape index: {1}]
  %5 = xla_tuple %s3, %s4
  %s6 = sld [smem:[#allocation0]]
  $region30: #{scnn_single_conv_b5_forward.1} parent=0
    _
  %s8 = ssub.s32 1, %s6
  %s9 = scalar_select 0, %s8, %s6
  // Predicated region
  $region2: #{scnn_single_conv_b5_forward.1} parent=0 // pred_check
    _
  $region3: #{scnn_single_conv_b5_forward.1} parent=0 // pred_check_branch
    %11 = sbr.rel (0) target = $region5
  $region4: #{scnn_single_conv_b5_forward.1} parent=0 // pred_region
    _
  $region5: #{scnn_single_conv_b5_forward.1} parent=0 // pred_fallthru
    _
  // Predicated region
  $region6: #{scnn_single_conv_b5_forward.1} parent=0 // pred_check
    _
  $region7: #{scnn_single_conv_b5_forward.1} parent=0 // pred_check_branch
    %13 = sbr.rel (0) target = $region9
  $region8: #{scnn_single_conv_b5_forward.1} parent=0 // pred_region
    _
  $region9: #{scnn_single_conv_b5_forward.1} parent=0 // pred_fallthru
    _
  // Predicated region
  $region10: #{scnn_single_conv_b5_forward.1} parent=0 // pred_check
    _
  $region11: #{scnn_single_conv_b5_forward.1} parent=0 // pred_check_branch
    %15 = sbr.rel (0) target = $region13
  $region12: #{scnn_single_conv_b5_forward.1} parent=0 // pred_region
    _
  $region13: #{scnn_single_conv_b5_forward.1} parent=0 // pred_fallthru
    _
  %v16 = vlaneseq
  %v17 = vand.u32 %v16, 127
  %v18 = vadd.s32 %v17, 128
  %vm19 = vcmp.lt.s32.totalorder %v17, 0
  %v20 = vsub.s32 0, %v17
  %v21 = vsel %vm19, %v20, %v17
  %v22 = vshrl.u32 %v21, 4
  %v23 = vand.u32 %v21, 15
  %v24 = vsub.s32 0, %v23
  %v25 = vsel %vm19, %v24, %v23
  %vm26 = vcmp.lt.s32.totalorder %v18, 0
  %v27 = vsub.s32 0, %v18
  %v28 = vsel %vm26, %v27, %v18
  %v29 = vshrl.u32 %v28, 4
  %v30 = vand.u32 %v28, 15
  %v31 = vsub.s32 0, %v30
  %v32 = vsel %vm26, %v31, %v30
  %vm33 = vcmp.ne.s32.totalorder %v25, 0
  %vm34 = vcmp.ne.s32.totalorder %v32, 0
  %vm35 = vcmp.lt.s32.totalorder %v25, 0
  %vm36 = vcmp.lt.s32.totalorder %v32, 0
  %vm37 = vmand %vm35, %vm33
  %vm38 = vmand %vm36, %vm34
  %v39 = vadd.s32 %v25, 16
  %v40 = vadd.s32 %v32, 16
  %v41 = vsel %vm37, %v39, %v25
  %v42 = vsel %vm38, %v40, %v32
  %vm43 = vcmp.ge.s32.totalorder %v41, 1
  %vm44 = vcmp.ge.s32.totalorder %v42, 1
  %vm45 = vcmp.le.s32.totalorder %v41, 14
  %vm46 = vcmp.le.s32.totalorder %v42, 14
  %v47 = vld [vmem:[%s1] sm:$0xff]
  %v48 = vld [vmem:[%s2] sm:$0xff]
  %v49 = vld [vmem:[%s0] sm:$0xff]
  %v51 = vcombine.high %v49, %v49
  %52 = vrot.lane.b32.xlu0 %v49, 17
  %v53 = vpop.permute.xlu0 %52
  %54 = vrot.lane.b32.xlu0 %v51, 17
  %v55 = vpop.permute.xlu0 %54
  %vm56 = vcmask 138240
  %v57 = vsel %vm56, %v53, %v55
  %v60 = vsel %vm56, 0.0, %v53
  %v61 = vsel %vm43, 1, 0
  %v62 = vsel %vm44, 1, 0
  %vm63 = vcmp.eq.s32.totalorder %v61, 1
  %vm64 = vcmp.eq.s32.totalorder %v62, 1
  %v65 = vsel %vm63, %v60, 0.0
  %v66 = vsel %vm64, %v57, 0.0
  %67 = vrot.lane.b32.xlu0 %v49, 16
  %v68 = vpop.permute.xlu0 %67
  %69 = vrot.lane.b32.xlu0 %v51, 16
  %v70 = vpop.permute.xlu0 %69
  %vm71 = vcmask 130048
  %v72 = vsel %vm71, %v68, %v70
  %v74 = vsel %vm71, 0.0, %v68
  %75 = vrot.lane.b32.xlu0 %v49, 15
  %v76 = vpop.permute.xlu0 %75
  %77 = vrot.lane.b32.xlu0 %v51, 15
  %v78 = vpop.permute.xlu0 %77
  %vm79 = vcmask 121856
  %v80 = vsel %vm79, %v76, %v78
  %v83 = vsel %vm79, 0.0, %v76
  %v84 = vsel %vm45, 1, 0
  %v85 = vsel %vm46, 1, 0
  %vm86 = vcmp.eq.s32.totalorder %v84, 1
  %vm87 = vcmp.eq.s32.totalorder %v85, 1
  %v88 = vsel %vm86, %v83, 0.0
  %v89 = vsel %vm87, %v80, 0.0
  %90 = vrot.lane.b32.xlu0 %v49, 1
  %v91 = vpop.permute.xlu0 %90
  %92 = vrot.lane.b32.xlu0 %v51, 1
  %v93 = vpop.permute.xlu0 %92
  %vm94 = vcmask 7168
  %v95 = vsel %vm94, %v91, %v93
  %v98 = vsel %vm94, 0.0, %v91
  %v99 = vsel %vm63, %v98, 0.0
  %v100 = vsel %vm64, %v95, 0.0
  %101 = vrot.lane.b32.xlu0 %v49, 127
  %v102 = vpop.permute.xlu0 %101
  %103 = vrot.lane.b32.xlu0 %v51, 127
  %v104 = vpop.permute.xlu0 %103
  %vm105 = vcmask 1039360
  %v106 = vsel %vm105, %v102, %v104
  %v109 = vsel %vm105, %v104, 0.0
  %v110 = vsel %vm86, %v106, 0.0
  %v111 = vsel %vm87, %v109, 0.0
  %112 = vrot.lane.b32.xlu0 %v49, 113
  %v113 = vpop.permute.xlu0 %112
  %114 = vrot.lane.b32.xlu0 %v51, 113
  %v115 = vpop.permute.xlu0 %114
  %vm116 = vcmask 924672
  %v117 = vsel %vm116, %v113, %v115
  %v120 = vsel %vm116, %v115, 0.0
  %v121 = vsel %vm63, %v117, 0.0
  %v122 = vsel %vm64, %v120, 0.0
  %123 = vrot.lane.b32.xlu0 %v49, 112
  %v124 = vpop.permute.xlu0 %123
  %125 = vrot.lane.b32.xlu0 %v51, 112
  %v126 = vpop.permute.xlu0 %125
  %vm127 = vcmask 916480
  %v128 = vsel %vm127, %v124, %v126
  %v130 = vsel %vm127, %v126, 0.0
  %131 = vrot.lane.b32.xlu0 %v49, 111
  %v132 = vpop.permute.xlu0 %131
  %133 = vrot.lane.b32.xlu0 %v51, 111
  %v134 = vpop.permute.xlu0 %133
  %vm135 = vcmask 908288
  %v136 = vsel %vm135, %v132, %v134
  %v139 = vsel %vm135, %v134, 0.0
  %v140 = vsel %vm86, %v136, 0.0
  %v141 = vsel %vm87, %v139, 0.0
  %v143 = vrot.slane %v74, 4
  %v144 = vrot.slane %v72, 4
  %v149 = vrot.slane %v99, 4
  %v150 = vrot.slane %v100, 4
  %v156 = vrot.slane %v110, 4
  %v157 = vrot.slane %v111, 4
  %v161 = vrot.slane %v128, 4
  %v162 = vrot.slane %v130, 4
  %vm165 = vcmask 1043456
  %v166 = vsel %vm165, %v65, %v143
  %v167 = vsel %vm165, %v66, %v144
  %v168 = vsel %vm165, %v88, %v149
  %v169 = vsel %vm165, %v89, %v150
  %v170 = vsel %vm165, %v49, %v156
  %v171 = vsel %vm165, %v51, %v157
  %v172 = vsel %vm165, %v121, %v161
  %v173 = vsel %vm165, %v122, %v162
  %175 = vset.pattern.permute.xlu0 0
  %176 = vperm.xlu0 %175, %v48
  %v177 = vpop.permute.xlu0 %176
  %vm179 = vcmask 293888
  %v181 = vsel %vm179, %v47, 0
  %v184 = vsel %vm165, %v140, 0
  %v187 = vsel %vm165, %v141, 0
  %189 = vmatprep.subr.mxu0 %v167
  %190 = vmatpush1.msra.mxu0 %v166
  %191 = vmatprep.subr.mxu0 %v169
  %192 = vmatpush1.msra.mxu0 %v168
  %193 = vmatprep.subr.mxu0 %v171
  %194 = vmatpush1.msra.mxu0 %v170
  %195 = vmatprep.subr.mxu0 %v173
  %196 = vmatpush1.msra.mxu0 %v172
  %197 = vmatprep.subr.mxu0 %v187
  %198 = vmatpush1.msra.mxu0 %v184
  %199 = vmatprep.subr.mxu0 0.0
  %200 = vmatpush1.msra.mxu0 0.0
  %201 = vmatprep.subr.mxu0 0.0
  %202 = vmatpush1.msra.mxu0 0.0
  %203 = vmatprep.subr.mxu0 0.0
  %204 = vmatpush1.msra.mxu0 0.0
  %205 = vmatprep.subr.mxu0 0.0
  %206 = vmatpush1.msra.mxu0 0.0
  %207 = vmatprep.subr.mxu0 0.0
  %208 = vmatpush1.msra.mxu0 0.0
  %209 = vmatprep.subr.mxu0 0.0
  %210 = vmatpush1.msra.mxu0 0.0
  %211 = vmatprep.subr.mxu0 0.0
  %212 = vmatpush1.msra.mxu0 0.0
  %213 = vmatprep.subr.mxu0 0.0
  %214 = vmatpush1.msra.mxu0 0.0
  %215 = vmatprep.subr.mxu0 0.0
  %216 = vmatpush1.msra.mxu0 0.0
  %217 = vmatprep.subr.mxu0 0.0
  %218 = vmatpush1.msra.mxu0 0.0
  %219 = vmatprep.subr.mxu0 0.0
  %220 = vmatpush1.msra.mxu0 0.0
  %221 = vmatprep.subr.mxu0 0.0
  %222 = vmatpush1.msra.mxu0 0.0
  %223 = vmatprep.subr.mxu0 0.0
  %224 = vmatpush1.msra.mxu0 0.0
  %225 = vmatprep.subr.mxu0 0.0
  %226 = vmatpush1.msra.mxu0 0.0
  %227 = vmatprep.subr.mxu0 0.0
  %228 = vmatpush1.msra.mxu0 0.0
  %229 = vmatprep.subr.mxu0 0.0
  %230 = vmatpush1.msra.mxu0 0.0
  %231 = vmatprep.subr.mxu0 0.0
  %232 = vmatpush1.msra.mxu0 0.0
  %233 = vmatprep.subr.mxu0 0.0
  %234 = vmatpush1.msra.mxu0 0.0
  %235 = vmatprep.subr.mxu0 0.0
  %236 = vmatpush1.msra.mxu0 0.0
  %237 = vmatprep.subr.mxu0 0.0
  %238 = vmatpush1.msra.mxu0 0.0
  %239 = vmatprep.subr.mxu0 0.0
  %240 = vmatpush1.msra.mxu0 0.0
  %241 = vmatprep.subr.mxu0 0.0
  %242 = vmatpush1.msra.mxu0 0.0
  %243 = vmatprep.subr.mxu0 0.0
  %244 = vmatpush1.msra.mxu0 0.0
  %245 = vmatprep.subr.mxu0 0.0
  %246 = vmatpush1.msra.mxu0 0.0
  %247 = vmatprep.subr.mxu0 0.0
  %248 = vmatpush1.msra.mxu0 0.0
  %249 = vmatprep.subr.mxu0 0.0
  %250 = vmatpush1.msra.mxu0 0.0
  %251 = vmatprep.subr.mxu0 0.0
  %252 = vmatpush1.msra.mxu0 0.0
  %253 = vmatprep.mubr.f32.mxu0 0.0
  %254 = vmatmul.mubr.f32.gmra.mrb[0].mxu0 %v181
  %v255 = vpop.f32.mrb[0].mxu0
  %v256 = vadd.f32 %v177, %v255
  %v257 = vpop.f32.mrb[0].mxu0
  %v258 = vadd.f32 %v177, %v257
  %259 = vdwg.mxu0
  %vm260 = vcmp.gt.f32.partialorder %v256, 0.3
  %vm261 = vcmp.gt.f32.partialorder %v258, 0.3
  %v262 = vsel %vm260, 1, 0
  %v263 = vsel %vm261, 1, 0
  %v264 = vcvt.s32.f32 %v262
  %v265 = vcvt.s32.f32 %v263
  %266 = vst [vmem:[%s3] sm:$0xff] %v264
  %267 = vst [vmem:[%s3 + $0x8] sm:$0xff] %v265
  %v268 = vmul.f32 %v256, 0.2
  %v269 = vmul.f32 %v258, 0.2
  %v270 = vsub.f32 1.0, %v264
  %v271 = vsub.f32 1.0, %v265
  %v272 = vmul.f32 %v268, %v270
  %v273 = vmul.f32 %v269, %v271
  %274 = vst [vmem:[%s4] sm:$0xff] %v272
  %275 = vst [vmem:[%s4 + $0x8] sm:$0xff] %v273
  %s276 = scalar_lea.vmem %s0, 8
  %v277 = vld [vmem:[%s276] sm:$0xff]
  %v279 = vcombine.high %v277, %v277
  %280 = vrot.lane.b32.xlu0 %v277, 17
  %v281 = vpop.permute.xlu0 %280
  %282 = vrot.lane.b32.xlu0 %v279, 17
  %v283 = vpop.permute.xlu0 %282
  %v284 = vsel %vm56, %v281, %v283
  %v287 = vsel %vm56, 0.0, %v281
  %v288 = vsel %vm63, %v287, 0.0
  %v289 = vsel %vm64, %v284, 0.0
  %290 = vrot.lane.b32.xlu0 %v277, 16
  %v291 = vpop.permute.xlu0 %290
  %292 = vrot.lane.b32.xlu0 %v279, 16
  %v293 = vpop.permute.xlu0 %292
  %v294 = vsel %vm71, %v291, %v293
  %v296 = vsel %vm71, 0.0, %v291
  %297 = vrot.lane.b32.xlu0 %v277, 15
  %v298 = vpop.permute.xlu0 %297
  %299 = vrot.lane.b32.xlu0 %v279, 15
  %v300 = vpop.permute.xlu0 %299
  %v301 = vsel %vm79, %v298, %v300
  %v304 = vsel %vm79, 0.0, %v298
  %v305 = vsel %vm86, %v304, 0.0
  %v306 = vsel %vm87, %v301, 0.0
  %307 = vrot.lane.b32.xlu0 %v277, 1
  %v308 = vpop.permute.xlu0 %307
  %309 = vrot.lane.b32.xlu0 %v279, 1
  %v310 = vpop.permute.xlu0 %309
  %v311 = vsel %vm94, %v308, %v310
  %v314 = vsel %vm94, 0.0, %v308
  %v315 = vsel %vm63, %v314, 0.0
  %v316 = vsel %vm64, %v311, 0.0
  %317 = vrot.lane.b32.xlu0 %v277, 127
  %v318 = vpop.permute.xlu0 %317
  %319 = vrot.lane.b32.xlu0 %v279, 127
  %v320 = vpop.permute.xlu0 %319
  %v321 = vsel %vm105, %v318, %v320
  %v324 = vsel %vm105, %v320, 0.0
  %v325 = vsel %vm86, %v321, 0.0
  %v326 = vsel %vm87, %v324, 0.0
  %327 = vrot.lane.b32.xlu0 %v277, 113
  %v328 = vpop.permute.xlu0 %327
  %329 = vrot.lane.b32.xlu0 %v279, 113
  %v330 = vpop.permute.xlu0 %329
  %v331 = vsel %vm116, %v328, %v330
  %v334 = vsel %vm116, %v330, 0.0
  %v335 = vsel %vm63, %v331, 0.0
  %v336 = vsel %vm64, %v334, 0.0
  %337 = vrot.lane.b32.xlu0 %v277, 112
  %v338 = vpop.permute.xlu0 %337
  %339 = vrot.lane.b32.xlu0 %v279, 112
  %v340 = vpop.permute.xlu0 %339
  %v341 = vsel %vm127, %v338, %v340
  %v343 = vsel %vm127, %v340, 0.0
  %344 = vrot.lane.b32.xlu0 %v277, 111
  %v345 = vpop.permute.xlu0 %344
  %346 = vrot.lane.b32.xlu0 %v279, 111
  %v347 = vpop.permute.xlu0 %346
  %v348 = vsel %vm135, %v345, %v347
  %v351 = vsel %vm135, %v347, 0.0
  %v352 = vsel %vm86, %v348, 0.0
  %v353 = vsel %vm87, %v351, 0.0
  %v355 = vrot.slane %v296, 4
  %v356 = vrot.slane %v294, 4
  %v361 = vrot.slane %v315, 4
  %v362 = vrot.slane %v316, 4
  %v368 = vrot.slane %v325, 4
  %v369 = vrot.slane %v326, 4
  %v373 = vrot.slane %v341, 4
  %v374 = vrot.slane %v343, 4
  %v377 = vsel %vm165, %v288, %v355
  %v378 = vsel %vm165, %v289, %v356
  %v379 = vsel %vm165, %v305, %v361
  %v380 = vsel %vm165, %v306, %v362
  %v381 = vsel %vm165, %v277, %v368
  %v382 = vsel %vm165, %v279, %v369
  %v383 = vsel %vm165, %v335, %v373
  %v384 = vsel %vm165, %v336, %v374
  %v386 = vsel %vm165, %v352, 0
  %v389 = vsel %vm165, %v353, 0
  %391 = vmatprep.subr.mxu0 %v378
  %392 = vmatpush1.msra.mxu0 %v377
  %393 = vmatprep.subr.mxu0 %v380
  %394 = vmatpush1.msra.mxu0 %v379
  %395 = vmatprep.subr.mxu0 %v382
  %396 = vmatpush1.msra.mxu0 %v381
  %397 = vmatprep.subr.mxu0 %v384
  %398 = vmatpush1.msra.mxu0 %v383
  %399 = vmatprep.subr.mxu0 %v389
  %400 = vmatpush1.msra.mxu0 %v386
  %401 = vmatprep.subr.mxu0 0.0
  %402 = vmatpush1.msra.mxu0 0.0
  %403 = vmatprep.subr.mxu0 0.0
  %404 = vmatpush1.msra.mxu0 0.0
  %405 = vmatprep.subr.mxu0 0.0
  %406 = vmatpush1.msra.mxu0 0.0
  %407 = vmatprep.subr.mxu0 0.0
  %408 = vmatpush1.msra.mxu0 0.0
  %409 = vmatprep.subr.mxu0 0.0
  %410 = vmatpush1.msra.mxu0 0.0
  %411 = vmatprep.subr.mxu0 0.0
  %412 = vmatpush1.msra.mxu0 0.0
  %413 = vmatprep.subr.mxu0 0.0
  %414 = vmatpush1.msra.mxu0 0.0
  %415 = vmatprep.subr.mxu0 0.0
  %416 = vmatpush1.msra.mxu0 0.0
  %417 = vmatprep.subr.mxu0 0.0
  %418 = vmatpush1.msra.mxu0 0.0
  %419 = vmatprep.subr.mxu0 0.0
  %420 = vmatpush1.msra.mxu0 0.0
  %421 = vmatprep.subr.mxu0 0.0
  %422 = vmatpush1.msra.mxu0 0.0
  %423 = vmatprep.subr.mxu0 0.0
  %424 = vmatpush1.msra.mxu0 0.0
  %425 = vmatprep.subr.mxu0 0.0
  %426 = vmatpush1.msra.mxu0 0.0
  %427 = vmatprep.subr.mxu0 0.0
  %428 = vmatpush1.msra.mxu0 0.0
  %429 = vmatprep.subr.mxu0 0.0
  %430 = vmatpush1.msra.mxu0 0.0
  %431 = vmatprep.subr.mxu0 0.0
  %432 = vmatpush1.msra.mxu0 0.0
  %433 = vmatprep.subr.mxu0 0.0
  %434 = vmatpush1.msra.mxu0 0.0
  %435 = vmatprep.subr.mxu0 0.0
  %436 = vmatpush1.msra.mxu0 0.0
  %437 = vmatprep.subr.mxu0 0.0
  %438 = vmatpush1.msra.mxu0 0.0
  %439 = vmatprep.subr.mxu0 0.0
  %440 = vmatpush1.msra.mxu0 0.0
  %441 = vmatprep.subr.mxu0 0.0
  %442 = vmatpush1.msra.mxu0 0.0
  %443 = vmatprep.subr.mxu0 0.0
  %444 = vmatpush1.msra.mxu0 0.0
  %445 = vmatprep.subr.mxu0 0.0
  %446 = vmatpush1.msra.mxu0 0.0
  %447 = vmatprep.subr.mxu0 0.0
  %448 = vmatpush1.msra.mxu0 0.0
  %449 = vmatprep.subr.mxu0 0.0
  %450 = vmatpush1.msra.mxu0 0.0
  %451 = vmatprep.subr.mxu0 0.0
  %452 = vmatpush1.msra.mxu0 0.0
  %453 = vmatprep.subr.mxu0 0.0
  %454 = vmatpush1.msra.mxu0 0.0
  %455 = vmatprep.mubr.f32.mxu0 0.0
  %456 = vmatmul.mubr.f32.gmra.mrb[0].mxu0 %v181
  %v457 = vpop.f32.mrb[0].mxu0
  %v458 = vadd.f32 %v177, %v457
  %v459 = vpop.f32.mrb[0].mxu0
  %v460 = vadd.f32 %v177, %v459
  %461 = vdwg.mxu0
  %vm462 = vcmp.gt.f32.partialorder %v458, 0.3
  %vm463 = vcmp.gt.f32.partialorder %v460, 0.3
  %v464 = vsel %vm462, 1, 0
  %v465 = vsel %vm463, 1, 0
  %v466 = vcvt.s32.f32 %v464
  %v467 = vcvt.s32.f32 %v465
  %s468 = scalar_lea.vmem %s3, 16
  %469 = vst [vmem:[%s468] sm:$0xff] %v466
  %470 = vst [vmem:[%s468 + $0x8] sm:$0xff] %v467
  %v471 = vmul.f32 %v458, 0.2
  %v472 = vmul.f32 %v460, 0.2
  %v473 = vsub.f32 1.0, %v466
  %v474 = vsub.f32 1.0, %v467
  %v475 = vmul.f32 %v471, %v473
  %v476 = vmul.f32 %v472, %v474
  %s477 = scalar_lea.vmem %s4, 16
  %478 = vst [vmem:[%s477] sm:$0xff] %v475
  %479 = vst [vmem:[%s477 + $0x8] sm:$0xff] %v476
  // Predicated region
  $region14: #{scnn_single_conv_b5_forward.1} parent=0 // pred_check
    _
  $region15: #{scnn_single_conv_b5_forward.1} parent=0 // pred_check_branch
    %481 = sbr.rel (0) target = $region17
  $region16: #{scnn_single_conv_b5_forward.1} parent=0 // pred_region
    _
  $region17: #{scnn_single_conv_b5_forward.1} parent=0 // pred_fallthru
    _
  // Predicated region
  $region18: #{scnn_single_conv_b5_forward.1} parent=0 // pred_check
    _
  $region19: #{scnn_single_conv_b5_forward.1} parent=0 // pred_check_branch
    %483 = sbr.rel (0) target = $region21
  $region20: #{scnn_single_conv_b5_forward.1} parent=0 // pred_region
    _
  $region21: #{scnn_single_conv_b5_forward.1} parent=0 // pred_fallthru
    _
  // Predicated region
  $region22: #{scnn_single_conv_b5_forward.1} parent=0 // pred_check
    _
  $region23: #{scnn_single_conv_b5_forward.1} parent=0 // pred_check_branch
    %485 = sbr.rel (0) target = $region25
  $region24: #{scnn_single_conv_b5_forward.1} parent=0 // pred_region
    _
  $region25: #{scnn_single_conv_b5_forward.1} parent=0 // pred_fallthru
    _
  // Predicated region
  $region26: #{scnn_single_conv_b5_forward.1} parent=0 // pred_check
    _
  $region27: #{scnn_single_conv_b5_forward.1} parent=0 // pred_check_branch
    %487 = sbr.rel (0) target = $region29
  $region28: #{scnn_single_conv_b5_forward.1} parent=0 // pred_region
    _
  $region29: #{scnn_single_conv_b5_forward.1} parent=0 // pred_fallthru
    _

</llo_original>
